<compile_context>
chip_gen: v6e
topology: v6e:2x2x1
jax: 0.10.0
libtpu: 0.0.40
codegen_flags: <defaults>
</compile_context>

<pallas_src>
import functools

import jax
import jax.numpy as jnp
from jax import lax
from jax.experimental import pallas as pl
from jax.experimental.pallas import tpu as pltpu


def _round_up(x, m):
    return ((x + m - 1) // m) * m


@functools.lru_cache(maxsize=1)
def _chip_config():
    """Returns (vmem_limit_bytes, double-buffered per-step VMEM budget, min grid blocks)."""
    try:
        kind = jax.devices()[0].device_kind.lower()
    except Exception:
        kind = ""
    two_tensorcores = any(t in kind for t in ("v7", "tpu7", "v4", "v3"))
    if "v7" in kind or "tpu7" in kind:
        # v7x: only 64 MiB VMEM per TensorCore -> cap well below physical.
        vmem_limit, budget = 48 << 20, 36 << 20
    elif "v3" in kind:
        vmem_limit, budget = 12 << 20, 8 << 20
    elif kind:
        # v4 / v5e / v5p / v6e: 128 MiB physical VMEM (scoped default 16-32 MiB).
        vmem_limit, budget = 64 << 20, 44 << 20
    else:
        vmem_limit, budget = 48 << 20, 32 << 20
    return vmem_limit, budget, (2 if two_tensorcores else 1)


def _choose_channel_block(C, B, HW, F, feat_itemsize, par_itemsize, out_itemsize,
                          budget_bytes, min_blocks):
    """Largest channel block whose double-buffered VMEM footprint fits the budget,
    while giving every TensorCore at least one grid step (min_blocks)."""

    def fits(tc):
        feat = tc * _round_up(B, 8) * _round_up(HW, 128) * feat_itemsize
        ker = tc * _round_up(F, 8) * _round_up(HW, 128) * par_itemsize
        out = tc * _round_up(B, 8) * _round_up(F, 128) * out_itemsize
        return 2 * (feat + ker + out) <= budget_bytes  # x2: double-buffered pipeline

    # Start from ceil(C / min_blocks) so 2-TC chips get >= 2 grid steps, then
    # shrink until the block fits the per-chip VMEM budget.
    tc = max(1, min(C, -(-C // max(min_blocks, 1))))
    while tc > 1 and not fits(tc):
        tc = max(1, tc // 2)
    # TODO(synk): if even tc=1 overflows VMEM (astronomically large B*HW), a
    # second grid axis over the batch would be needed.
    return tc


def _spatial_embed_block_kernel(f_ref, k_ref, o_ref):
    # f_ref: (TC, B, HW)  channel-major feature block
    # k_ref: (TC, F, HW)  lane-dense learned-kernel block
    # o_ref: (TC, B, F)
    # Single contraction over HW with the channel as the leading batch dim
    # (flash-attention einsum pattern): MXU matmuls, f32 accumulation, no
    # per-channel slicing / concatenation inside the kernel.
    acc = lax.dot_general(
        f_ref[...], k_ref[...],
        dimension_numbers=(((2,), (2,)), ((0,), (0,))),
        preferred_element_type=jnp.float32,
    )
    o_ref[...] = acc.astype(o_ref.dtype)


def prepare_kernel_param(kernel_chwf):
    """One-time (init / parameter-load time) re-layout of the learned
    [C, H, W, F] parameter to the lane-dense [C, F, H*W] layout the kernel
    consumes. Do NOT call this per forward step."""
    C, H, W, F = kernel_chwf.shape
    return jnp.transpose(kernel_chwf.reshape(C, H * W, F), (0, 2, 1))


@functools.partial(jax.jit, static_argnames=("compute_dtype",))
def spatial_learned_embeddings(features, kernel_cfh, *, compute_dtype=None):
    """features: [B, C, H, W] (or [C, H, W] unbatched);
    kernel_cfh: [C, F, H*W] as produced by `prepare_kernel_param`.
    Returns [B, C*F] (or [C*F] if unbatched), matching the PyTorch module.
    `compute_dtype=jnp.bfloat16` optionally halves HBM traffic (f32 accumulation
    is kept inside the kernel)."""
    original_ndim = features.ndim
    if original_ndim == 3:
        features = features[None]
    B, C, H, W = features.shape
    Ck, F, HWk = kernel_cfh.shape
    HW = H * W
    assert Ck == C and HWk == HW, "parameter layout mismatch"

    out_dtype = jnp.result_type(features.dtype, kernel_cfh.dtype)
    in_dtype = compute_dtype if compute_dtype is not None else out_dtype

    # Free reshape + one channel-major transpose of the feature map so the
    # in-kernel contraction has its batch (channel) dim leading.  This extra
    # read+write of the feature tensor is small relative to the mandatory
    # parameter read whenever B <= F (the typical regime; F defaults to 8), and
    # it removes every per-channel sublane gather from the kernel body.
    # TODO(synk): for B >> F a variant that keeps [B, C, HW] and re-lays the
    # block inside the kernel would save this extra pass over the features.
    f_cbh = jnp.transpose(features.reshape(B, C, HW), (1, 0, 2)).astype(in_dtype)
    k_cfh = kernel_cfh.astype(in_dtype)

    vmem_limit, budget, min_blocks = _chip_config()
    itemsize = jnp.dtype(in_dtype).itemsize
    tc = _choose_channel_block(
        C, B, HW, F, itemsize, itemsize, jnp.dtype(out_dtype).itemsize,
        budget, min_blocks)
    n_blocks = pl.cdiv(C, tc)

    out_cbf = pl.pallas_call(
        _spatial_embed_block_kernel,
        out_shape=jax.ShapeDtypeStruct((C, B, F), out_dtype),
        grid=(n_blocks,),
        in_specs=[
            pl.BlockSpec((tc, B, HW), lambda c: (c, 0, 0)),
            pl.BlockSpec((tc, F, HW), lambda c: (c, 0, 0)),
        ],
        out_specs=pl.BlockSpec((tc, B, F), lambda c: (c, 0, 0)),
        compiler_params=pltpu.CompilerParams(
            dimension_semantics=("parallel",),
            vmem_limit_bytes=vmem_limit,
        ),
    )(f_cbh, k_cfh)

    # Tiny (C, B, F) -> (B, C*F) reorder: B*C*F elements, negligible HBM traffic.
    out = jnp.transpose(out_cbf, (1, 0, 2)).reshape(B, C * F)
    if original_ndim == 3:
        out = out[0]
    return out


def init_kernel_param(key, channel, height, width, num_features, dtype=jnp.float32):
    # kaiming_normal_(mode='fan_in', nonlinearity='linear') on a (C, H, W, F)
    # tensor: fan_in = H * W * F, gain = 1, std = 1 / sqrt(fan_in).
    fan_in = height * width * num_features
    std = 1.0 / jnp.sqrt(jnp.asarray(fan_in, dtype))
    return jax.random.normal(key, (channel, height, width, num_features), dtype) * std


class SpatialLearnedEmbeddings:
    """JAX/Pallas equivalent of the PyTorch module. The parameter re-layout to
    [C, F, H*W] happens once here at init, not in the per-call forward path."""

    # TODO(synk): the PyTorch forward reads `features.last_hidden_state`
    # (a framework container); here the raw feature tensor is passed directly.

    def __init__(self, height, width, channel, num_features=8, *, key,
                 dtype=jnp.float32):
        self.height, self.width = height, width
        self.channel, self.num_features = channel, num_features
        self.kernel = init_kernel_param(key, channel, height, width,
                                        num_features, dtype)
        self.kernel_cfh = prepare_kernel_param(self.kernel)

    def __call__(self, features):
        return spatial_learned_embeddings(features, self.kernel_cfh)


if __name__ == "__main__":
    B, C, H, W, F = 2, 4, 16, 16, 8

    key = jax.random.PRNGKey(0)
    k_feat, k_param = jax.random.split(key)

    features = jax.random.normal(k_feat, (B, C, H, W), jnp.float32)
    module = SpatialLearnedEmbeddings(H, W, C, F, key=k_param)

    out = module(features)
    out = jax.block_until_ready(out)

    # Pure-JAX reference of the same math (MXU f32-accumulation tolerance).
    ref = jnp.einsum("bchw,chwf->bcf", features, module.kernel).reshape(B, C * F)
    assert out.shape == (B, C * F)
    assert jnp.allclose(out, ref, atol=1e-5, rtol=1e-4), float(
        jnp.max(jnp.abs(out - ref)))

    print("KERNEL_OK")
</pallas_src>

<mosaic_0001>
module attributes {stable_mosaic.version = 11 : i64} {
  func.func @_spatial_embed_block_kernel(%arg0: i32, %arg1: memref<4x2x256xf32, #tpu.memory_space<vmem>>, %arg2: memref<4x8x256xf32, #tpu.memory_space<vmem>>, %arg3: memref<4x2x8xf32, #tpu.memory_space<vmem>>) attributes {dimension_semantics = [#tpu.dimension_semantics<parallel>], iteration_bounds = array<i64: 1>, scalar_prefetch = 0 : i64, scratch_operands = 0 : i64, tpu.core_type = #tpu.core_type<tc>, window_params = [{transform_indices = @transform_0, window_bounds = array<i64: 4, 2, 256>}, {transform_indices = @transform_1, window_bounds = array<i64: 4, 8, 256>}, {transform_indices = @transform_2, window_bounds = array<i64: 4, 2, 8>}]} {
    %c0 = arith.constant 0 : index
    %c0_0 = arith.constant 0 : index
    %c0_1 = arith.constant 0 : index
    %0 = vector.load %arg1[%c0, %c0_0, %c0_1] : memref<4x2x256xf32, #tpu.memory_space<vmem>>, vector<4x2x256xf32>
    %c0_2 = arith.constant 0 : index
    %c0_3 = arith.constant 0 : index
    %c0_4 = arith.constant 0 : index
    %1 = vector.load %arg2[%c0_2, %c0_3, %c0_4] : memref<4x8x256xf32, #tpu.memory_space<vmem>>, vector<4x8x256xf32>
    %cst = arith.constant dense<0.000000e+00> : vector<4x2x8xf32>
    %2 = tpu.matmul %0, %1, %cst {dimension_numbers = #tpu.dot_dimension_numbers<[2], [2], [1], [1], [0, 0, 0, 1, 1, 1], [0], [0]>} : vector<4x2x256xf32>, vector<4x8x256xf32>, vector<4x2x8xf32> -> vector<4x2x8xf32>
    %c0_5 = arith.constant 0 : index
    %c0_6 = arith.constant 0 : index
    %c0_7 = arith.constant 0 : index
    %3 = vector.load %arg3[%c0_5, %c0_6, %c0_7] : memref<4x2x8xf32, #tpu.memory_space<vmem>>, vector<4x2x8xf32>
    tpu.vector_store %arg3[%c0_5, %c0_6, %c0_7], %2 {strides = array<i32>} : memref<4x2x8xf32, #tpu.memory_space<vmem>>, vector<4x2x8xf32>,
    return
  }
  func.func @transform_0(%arg0: i32) -> (i32, i32, i32) {
    %c0_i32 = arith.constant 0 : i32
    %c0_i32_0 = arith.constant 0 : i32
    %c0_i32_1 = arith.constant 0 : i32
    return %arg0, %c0_i32, %c0_i32_0 : i32, i32, i32
  }
  func.func @transform_1(%arg0: i32) -> (i32, i32, i32) {
    %c0_i32 = arith.constant 0 : i32
    %c0_i32_0 = arith.constant 0 : i32
    %c0_i32_1 = arith.constant 0 : i32
    return %arg0, %c0_i32, %c0_i32_0 : i32, i32, i32
  }
  func.func @transform_2(%arg0: i32) -> (i32, i32, i32) {
    %c0_i32 = arith.constant 0 : i32
    %c0_i32_0 = arith.constant 0 : i32
    %c0_i32_1 = arith.constant 0 : i32
    return %arg0, %c0_i32, %c0_i32_0 : i32, i32, i32
  }
}

</mosaic_0001>

<llo_original>
// kernel: spatial_learned_embeddings.1
$region0: #{spatial_learned_embeddings.1}
  #allocation0 [shape = 'u32[]', space=smem, size = 0x4, offset = 0x4, fixed_abs, tag = 'smem constant byte address 0x4 - core index']
  #allocation1 [shape = 'u32[144,128]{1,0:T(1,128)}', space=vmem, size = 0x12000, scoped, tag = 'internal scratch']
  %s0 = inlined_call_operand.vmem [shape: f32[4,2,256], index: 0, kind: input, shape index: {}]
  %s1 = inlined_call_operand.vmem [shape: f32[4,8,256], index: 1, kind: input, shape index: {}]
  %s2 = inlined_call_operand.vmem [shape: f32[4,2,8], index: 2, kind: output, shape index: {}]
  %s3 = sld [smem:[#allocation0]]
  $region18: #{spatial_learned_embeddings.1} parent=0
    _
  %s5 = ssub.s32 1, %s3
  %s6 = scalar_select 0, %s5, %s3
  // Predicated region
  $region2: #{spatial_learned_embeddings.1} parent=0 // pred_check
    _
  $region3: #{spatial_learned_embeddings.1} parent=0 // pred_check_branch
    %8 = sbr.rel (0) target = $region5
  $region4: #{spatial_learned_embeddings.1} parent=0 // pred_region
    _
  $region5: #{spatial_learned_embeddings.1} parent=0 // pred_fallthru
    _
  // Predicated region
  $region6: #{spatial_learned_embeddings.1} parent=0 // pred_check
    _
  $region7: #{spatial_learned_embeddings.1} parent=0 // pred_check_branch
    %10 = sbr.rel (0) target = $region9
  $region8: #{spatial_learned_embeddings.1} parent=0 // pred_region
    _
  $region9: #{spatial_learned_embeddings.1} parent=0 // pred_fallthru
    _
  %v11 = vld [vmem:[%s0] sm:$0xf]
  %v12 = vld [vmem:[%s0 + $0x4] sm:$0xf]
  %v13 = vld [vmem:[%s0 + $0x8] sm:$0xf]
  %v14 = vld [vmem:[%s0 + $0xc] sm:$0xf]
  %v15 = vld [vmem:[%s1] sm:$0xff]
  %v16 = vld [vmem:[%s1 + $0x8] sm:$0xff]
  %v17 = vld [vmem:[%s1 + $0x10] sm:$0xff]
  %v18 = vld [vmem:[%s1 + $0x18] sm:$0xff]
  %v19 = vld [vmem:[%s1 + $0x20] sm:$0xff]
  %v20 = vld [vmem:[%s1 + $0x28] sm:$0xff]
  %v21 = vld [vmem:[%s1 + $0x30] sm:$0xff]
  %v22 = vld [vmem:[%s1 + $0x38] sm:$0xff]
  %v25 = vunpack.c.l.s4 1983009808
  %v26 = vunpack.c.0.s8 %v25
  %v27 = vlaneseq
  %v28 = vshrl.u32 %v27, 7
  %v29 = vsub.s32 %v26, %v28
  %v30 = vrot.slane %v11, %v29
  %v31 = vcombine.high %v30, %v30
  %34 = vmatprep.subr.mxu0 0.0
  %35 = vmatpush1.xpose.msra.mxu0 0.0
  %36 = vmatprep.subr.mxu0 0.0
  %37 = vmatpush1.xpose.msra.mxu0 0.0
  %38 = vmatprep.subr.mxu0 0.0
  %39 = vmatpush1.xpose.msra.mxu0 0.0
  %40 = vmatprep.subr.mxu0 0.0
  %41 = vmatpush1.xpose.msra.mxu0 0.0
  %42 = vmatprep.subr.mxu0 0.0
  %43 = vmatpush1.xpose.msra.mxu0 0.0
  %44 = vmatprep.subr.mxu0 0.0
  %45 = vmatpush1.xpose.msra.mxu0 0.0
  %46 = vmatprep.subr.mxu0 0.0
  %47 = vmatpush1.xpose.msra.mxu0 0.0
  %48 = vmatprep.subr.mxu0 0.0
  %49 = vmatpush1.xpose.msra.mxu0 0.0
  %50 = vmatprep.subr.mxu0 0.0
  %51 = vmatpush1.xpose.msra.mxu0 0.0
  %52 = vmatprep.subr.mxu0 0.0
  %53 = vmatpush1.xpose.msra.mxu0 0.0
  %54 = vmatprep.subr.mxu0 0.0
  %55 = vmatpush1.xpose.msra.mxu0 0.0
  %56 = vmatprep.subr.mxu0 0.0
  %57 = vmatpush1.xpose.msra.mxu0 0.0
  %58 = vmatprep.subr.mxu0 0.0
  %59 = vmatpush1.xpose.msra.mxu0 0.0
  %60 = vmatprep.subr.mxu0 0.0
  %61 = vmatpush1.xpose.msra.mxu0 0.0
  %62 = vmatprep.subr.mxu0 0.0
  %63 = vmatpush1.xpose.msra.mxu0 0.0
  %64 = vmatprep.subr.mxu0 %v16
  %65 = vmatpush1.xpose.msra.mxu0 %v15
  %66 = vmatprep.subr.mxu0 0.0
  %67 = vmatpush2.xpose.msra.mxu0 0.0
  %68 = vmatprep.subr.mxu0 0.0
  %69 = vmatpush2.xpose.msra.mxu0 0.0
  %70 = vmatprep.subr.mxu0 0.0
  %71 = vmatpush2.xpose.msra.mxu0 0.0
  %72 = vmatprep.subr.mxu0 0.0
  %73 = vmatpush2.xpose.msra.mxu0 0.0
  %74 = vmatprep.subr.mxu0 0.0
  %75 = vmatpush2.xpose.msra.mxu0 0.0
  %76 = vmatprep.subr.mxu0 0.0
  %77 = vmatpush2.xpose.msra.mxu0 0.0
  %78 = vmatprep.subr.mxu0 0.0
  %79 = vmatpush2.xpose.msra.mxu0 0.0
  %80 = vmatprep.subr.mxu0 0.0
  %81 = vmatpush2.xpose.msra.mxu0 0.0
  %82 = vmatprep.subr.mxu0 0.0
  %83 = vmatpush2.xpose.msra.mxu0 0.0
  %84 = vmatprep.subr.mxu0 0.0
  %85 = vmatpush2.xpose.msra.mxu0 0.0
  %86 = vmatprep.subr.mxu0 0.0
  %87 = vmatpush2.xpose.msra.mxu0 0.0
  %88 = vmatprep.subr.mxu0 0.0
  %89 = vmatpush2.xpose.msra.mxu0 0.0
  %90 = vmatprep.subr.mxu0 0.0
  %91 = vmatpush2.xpose.msra.mxu0 0.0
  %92 = vmatprep.subr.mxu0 0.0
  %93 = vmatpush2.xpose.msra.mxu0 0.0
  %94 = vmatprep.subr.mxu0 0.0
  %95 = vmatpush2.xpose.msra.mxu0 0.0
  %96 = vmatprep.subr.mxu0 0.0
  %97 = vmatpush2.xpose.msra.mxu0 0.0
  %98 = vmatprep.mubr.f32.mxu0 %v31
  %99 = vmatmul.mubr.f32.gmra.mxu0 %v30
  %v100 = vpop.f32.mrf.mxu0
  %v101 = vadd.f32 0.0, %v100
  %v102 = vpop.f32.mrf.mxu0
  %103 = vdwg.mxu0
  %v106 = vunpack.c.l.s4 1983009808
  %v107 = vunpack.c.0.s8 %v106
  %v108 = vlaneseq
  %v109 = vshrl.u32 %v108, 7
  %v110 = vsub.s32 %v107, %v109
  %v111 = vrot.slane %v12, %v110
  %v112 = vcombine.high %v111, %v111
  %115 = vmatprep.subr.mxu0 0.0
  %116 = vmatpush1.xpose.msra.mxu0 0.0
  %117 = vmatprep.subr.mxu0 0.0
  %118 = vmatpush1.xpose.msra.mxu0 0.0
  %119 = vmatprep.subr.mxu0 0.0
  %120 = vmatpush1.xpose.msra.mxu0 0.0
  %121 = vmatprep.subr.mxu0 0.0
  %122 = vmatpush1.xpose.msra.mxu0 0.0
  %123 = vmatprep.subr.mxu0 0.0
  %124 = vmatpush1.xpose.msra.mxu0 0.0
  %125 = vmatprep.subr.mxu0 0.0
  %126 = vmatpush1.xpose.msra.mxu0 0.0
  %127 = vmatprep.subr.mxu0 0.0
  %128 = vmatpush1.xpose.msra.mxu0 0.0
  %129 = vmatprep.subr.mxu0 0.0
  %130 = vmatpush1.xpose.msra.mxu0 0.0
  %131 = vmatprep.subr.mxu0 0.0
  %132 = vmatpush1.xpose.msra.mxu0 0.0
  %133 = vmatprep.subr.mxu0 0.0
  %134 = vmatpush1.xpose.msra.mxu0 0.0
  %135 = vmatprep.subr.mxu0 0.0
  %136 = vmatpush1.xpose.msra.mxu0 0.0
  %137 = vmatprep.subr.mxu0 0.0
  %138 = vmatpush1.xpose.msra.mxu0 0.0
  %139 = vmatprep.subr.mxu0 0.0
  %140 = vmatpush1.xpose.msra.mxu0 0.0
  %141 = vmatprep.subr.mxu0 0.0
  %142 = vmatpush1.xpose.msra.mxu0 0.0
  %143 = vmatprep.subr.mxu0 0.0
  %144 = vmatpush1.xpose.msra.mxu0 0.0
  %145 = vmatprep.subr.mxu0 %v18
  %146 = vmatpush1.xpose.msra.mxu0 %v17
  %147 = vmatprep.subr.mxu0 0.0
  %148 = vmatpush2.xpose.msra.mxu0 0.0
  %149 = vmatprep.subr.mxu0 0.0
  %150 = vmatpush2.xpose.msra.mxu0 0.0
  %151 = vmatprep.subr.mxu0 0.0
  %152 = vmatpush2.xpose.msra.mxu0 0.0
  %153 = vmatprep.subr.mxu0 0.0
  %154 = vmatpush2.xpose.msra.mxu0 0.0
  %155 = vmatprep.subr.mxu0 0.0
  %156 = vmatpush2.xpose.msra.mxu0 0.0
  %157 = vmatprep.subr.mxu0 0.0
  %158 = vmatpush2.xpose.msra.mxu0 0.0
  %159 = vmatprep.subr.mxu0 0.0
  %160 = vmatpush2.xpose.msra.mxu0 0.0
  %161 = vmatprep.subr.mxu0 0.0
  %162 = vmatpush2.xpose.msra.mxu0 0.0
  %163 = vmatprep.subr.mxu0 0.0
  %164 = vmatpush2.xpose.msra.mxu0 0.0
  %165 = vmatprep.subr.mxu0 0.0
  %166 = vmatpush2.xpose.msra.mxu0 0.0
  %167 = vmatprep.subr.mxu0 0.0
  %168 = vmatpush2.xpose.msra.mxu0 0.0
  %169 = vmatprep.subr.mxu0 0.0
  %170 = vmatpush2.xpose.msra.mxu0 0.0
  %171 = vmatprep.subr.mxu0 0.0
  %172 = vmatpush2.xpose.msra.mxu0 0.0
  %173 = vmatprep.subr.mxu0 0.0
  %174 = vmatpush2.xpose.msra.mxu0 0.0
  %175 = vmatprep.subr.mxu0 0.0
  %176 = vmatpush2.xpose.msra.mxu0 0.0
  %177 = vmatprep.subr.mxu0 0.0
  %178 = vmatpush2.xpose.msra.mxu0 0.0
  %179 = vmatprep.mubr.f32.mxu0 %v112
  %180 = vmatmul.mubr.f32.gmra.mxu0 %v111
  %v181 = vpop.f32.mrf.mxu0
  %v182 = vadd.f32 0.0, %v181
  %v183 = vpop.f32.mrf.mxu0
  %184 = vdwg.mxu0
  %v187 = vunpack.c.l.s4 1983009808
  %v188 = vunpack.c.0.s8 %v187
  %v189 = vlaneseq
  %v190 = vshrl.u32 %v189, 7
  %v191 = vsub.s32 %v188, %v190
  %v192 = vrot.slane %v13, %v191
  %v193 = vcombine.high %v192, %v192
  %196 = vmatprep.subr.mxu0 0.0
  %197 = vmatpush1.xpose.msra.mxu0 0.0
  %198 = vmatprep.subr.mxu0 0.0
  %199 = vmatpush1.xpose.msra.mxu0 0.0
  %200 = vmatprep.subr.mxu0 0.0
  %201 = vmatpush1.xpose.msra.mxu0 0.0
  %202 = vmatprep.subr.mxu0 0.0
  %203 = vmatpush1.xpose.msra.mxu0 0.0
  %204 = vmatprep.subr.mxu0 0.0
  %205 = vmatpush1.xpose.msra.mxu0 0.0
  %206 = vmatprep.subr.mxu0 0.0
  %207 = vmatpush1.xpose.msra.mxu0 0.0
  %208 = vmatprep.subr.mxu0 0.0
  %209 = vmatpush1.xpose.msra.mxu0 0.0
  %210 = vmatprep.subr.mxu0 0.0
  %211 = vmatpush1.xpose.msra.mxu0 0.0
  %212 = vmatprep.subr.mxu0 0.0
  %213 = vmatpush1.xpose.msra.mxu0 0.0
  %214 = vmatprep.subr.mxu0 0.0
  %215 = vmatpush1.xpose.msra.mxu0 0.0
  %216 = vmatprep.subr.mxu0 0.0
  %217 = vmatpush1.xpose.msra.mxu0 0.0
  %218 = vmatprep.subr.mxu0 0.0
  %219 = vmatpush1.xpose.msra.mxu0 0.0
  %220 = vmatprep.subr.mxu0 0.0
  %221 = vmatpush1.xpose.msra.mxu0 0.0
  %222 = vmatprep.subr.mxu0 0.0
  %223 = vmatpush1.xpose.msra.mxu0 0.0
  %224 = vmatprep.subr.mxu0 0.0
  %225 = vmatpush1.xpose.msra.mxu0 0.0
  %226 = vmatprep.subr.mxu0 %v20
  %227 = vmatpush1.xpose.msra.mxu0 %v19
  %228 = vmatprep.subr.mxu0 0.0
  %229 = vmatpush2.xpose.msra.mxu0 0.0
  %230 = vmatprep.subr.mxu0 0.0
  %231 = vmatpush2.xpose.msra.mxu0 0.0
  %232 = vmatprep.subr.mxu0 0.0
  %233 = vmatpush2.xpose.msra.mxu0 0.0
  %234 = vmatprep.subr.mxu0 0.0
  %235 = vmatpush2.xpose.msra.mxu0 0.0
  %236 = vmatprep.subr.mxu0 0.0
  %237 = vmatpush2.xpose.msra.mxu0 0.0
  %238 = vmatprep.subr.mxu0 0.0
  %239 = vmatpush2.xpose.msra.mxu0 0.0
  %240 = vmatprep.subr.mxu0 0.0
  %241 = vmatpush2.xpose.msra.mxu0 0.0
  %242 = vmatprep.subr.mxu0 0.0
  %243 = vmatpush2.xpose.msra.mxu0 0.0
  %244 = vmatprep.subr.mxu0 0.0
  %245 = vmatpush2.xpose.msra.mxu0 0.0
  %246 = vmatprep.subr.mxu0 0.0
  %247 = vmatpush2.xpose.msra.mxu0 0.0
  %248 = vmatprep.subr.mxu0 0.0
  %249 = vmatpush2.xpose.msra.mxu0 0.0
  %250 = vmatprep.subr.mxu0 0.0
  %251 = vmatpush2.xpose.msra.mxu0 0.0
  %252 = vmatprep.subr.mxu0 0.0
  %253 = vmatpush2.xpose.msra.mxu0 0.0
  %254 = vmatprep.subr.mxu0 0.0
  %255 = vmatpush2.xpose.msra.mxu0 0.0
  %256 = vmatprep.subr.mxu0 0.0
  %257 = vmatpush2.xpose.msra.mxu0 0.0
  %258 = vmatprep.subr.mxu0 0.0
  %259 = vmatpush2.xpose.msra.mxu0 0.0
  %260 = vmatprep.mubr.f32.mxu0 %v193
  %261 = vmatmul.mubr.f32.gmra.mxu0 %v192
  %v262 = vpop.f32.mrf.mxu0
  %v263 = vadd.f32 0.0, %v262
  %v264 = vpop.f32.mrf.mxu0
  %265 = vdwg.mxu0
  %v268 = vunpack.c.l.s4 1983009808
  %v269 = vunpack.c.0.s8 %v268
  %v270 = vlaneseq
  %v271 = vshrl.u32 %v270, 7
  %v272 = vsub.s32 %v269, %v271
  %v273 = vrot.slane %v14, %v272
  %v274 = vcombine.high %v273, %v273
  %277 = vmatprep.subr.mxu0 0.0
  %278 = vmatpush1.xpose.msra.mxu0 0.0
  %279 = vmatprep.subr.mxu0 0.0
  %280 = vmatpush1.xpose.msra.mxu0 0.0
  %281 = vmatprep.subr.mxu0 0.0
  %282 = vmatpush1.xpose.msra.mxu0 0.0
  %283 = vmatprep.subr.mxu0 0.0
  %284 = vmatpush1.xpose.msra.mxu0 0.0
  %285 = vmatprep.subr.mxu0 0.0
  %286 = vmatpush1.xpose.msra.mxu0 0.0
  %287 = vmatprep.subr.mxu0 0.0
  %288 = vmatpush1.xpose.msra.mxu0 0.0
  %289 = vmatprep.subr.mxu0 0.0
  %290 = vmatpush1.xpose.msra.mxu0 0.0
  %291 = vmatprep.subr.mxu0 0.0
  %292 = vmatpush1.xpose.msra.mxu0 0.0
  %293 = vmatprep.subr.mxu0 0.0
  %294 = vmatpush1.xpose.msra.mxu0 0.0
  %295 = vmatprep.subr.mxu0 0.0
  %296 = vmatpush1.xpose.msra.mxu0 0.0
  %297 = vmatprep.subr.mxu0 0.0
  %298 = vmatpush1.xpose.msra.mxu0 0.0
  %299 = vmatprep.subr.mxu0 0.0
  %300 = vmatpush1.xpose.msra.mxu0 0.0
  %301 = vmatprep.subr.mxu0 0.0
  %302 = vmatpush1.xpose.msra.mxu0 0.0
  %303 = vmatprep.subr.mxu0 0.0
  %304 = vmatpush1.xpose.msra.mxu0 0.0
  %305 = vmatprep.subr.mxu0 0.0
  %306 = vmatpush1.xpose.msra.mxu0 0.0
  %307 = vmatprep.subr.mxu0 %v22
  %308 = vmatpush1.xpose.msra.mxu0 %v21
  %309 = vmatprep.subr.mxu0 0.0
  %310 = vmatpush2.xpose.msra.mxu0 0.0
  %311 = vmatprep.subr.mxu0 0.0
  %312 = vmatpush2.xpose.msra.mxu0 0.0
  %313 = vmatprep.subr.mxu0 0.0
  %314 = vmatpush2.xpose.msra.mxu0 0.0
  %315 = vmatprep.subr.mxu0 0.0
  %316 = vmatpush2.xpose.msra.mxu0 0.0
  %317 = vmatprep.subr.mxu0 0.0
  %318 = vmatpush2.xpose.msra.mxu0 0.0
  %319 = vmatprep.subr.mxu0 0.0
  %320 = vmatpush2.xpose.msra.mxu0 0.0
  %321 = vmatprep.subr.mxu0 0.0
  %322 = vmatpush2.xpose.msra.mxu0 0.0
  %323 = vmatprep.subr.mxu0 0.0
  %324 = vmatpush2.xpose.msra.mxu0 0.0
  %325 = vmatprep.subr.mxu0 0.0
  %326 = vmatpush2.xpose.msra.mxu0 0.0
  %327 = vmatprep.subr.mxu0 0.0
  %328 = vmatpush2.xpose.msra.mxu0 0.0
  %329 = vmatprep.subr.mxu0 0.0
  %330 = vmatpush2.xpose.msra.mxu0 0.0
  %331 = vmatprep.subr.mxu0 0.0
  %332 = vmatpush2.xpose.msra.mxu0 0.0
  %333 = vmatprep.subr.mxu0 0.0
  %334 = vmatpush2.xpose.msra.mxu0 0.0
  %335 = vmatprep.subr.mxu0 0.0
  %336 = vmatpush2.xpose.msra.mxu0 0.0
  %337 = vmatprep.subr.mxu0 0.0
  %338 = vmatpush2.xpose.msra.mxu0 0.0
  %339 = vmatprep.subr.mxu0 0.0
  %340 = vmatpush2.xpose.msra.mxu0 0.0
  %341 = vmatprep.mubr.f32.mxu0 %v274
  %342 = vmatmul.mubr.f32.gmra.mxu0 %v273
  %v343 = vpop.f32.mrf.mxu0
  %v344 = vadd.f32 0.0, %v343
  %v345 = vpop.f32.mrf.mxu0
  %346 = vdwg.mxu0
  %vm347 = vcmask 58368
  %348 = vst.msk [vmem:[%s2] sm:$0x3] %vm347, %v101
  %349 = vst.msk [vmem:[%s2 + $0x2] sm:$0x3] %vm347, %v182
  %350 = vst.msk [vmem:[%s2 + $0x4] sm:$0x3] %vm347, %v263
  %351 = vst.msk [vmem:[%s2 + $0x6] sm:$0x3] %vm347, %v344
  // Predicated region
  $region10: #{spatial_learned_embeddings.1} parent=0 // pred_check
    _
  $region11: #{spatial_learned_embeddings.1} parent=0 // pred_check_branch
    %353 = sbr.rel (0) target = $region13
  $region12: #{spatial_learned_embeddings.1} parent=0 // pred_region
    _
  $region13: #{spatial_learned_embeddings.1} parent=0 // pred_fallthru
    _
  // Predicated region
  $region14: #{spatial_learned_embeddings.1} parent=0 // pred_check
    _
  $region15: #{spatial_learned_embeddings.1} parent=0 // pred_check_branch
    %355 = sbr.rel (0) target = $region17
  $region16: #{spatial_learned_embeddings.1} parent=0 // pred_region
    _
  $region17: #{spatial_learned_embeddings.1} parent=0 // pred_fallthru
    _

</llo_original>
